<compile_context>
chip_gen: v7x
topology: tpu7x:2x2x1
jax: 0.10.0
libtpu: 0.0.40
codegen_flags: <defaults>
</compile_context>

<pallas_src>
import jax
import jax.numpy as jnp
from jax.experimental import pallas as pl
from jax.experimental.pallas import tpu as pltpu


_LANE = 128


def _round_up(x, m):
    return (x + m - 1) // m * m


def _pad2d(a, rows, cols):
    return jnp.pad(a, ((0, rows - a.shape[0]), (0, cols - a.shape[1])))


def _vmem_limit_bytes():
    cap = 128 * 1024 * 1024
    try:
        info = pltpu.get_tpu_info()
        cap = int(getattr(info, "vmem_capacity_bytes", cap))
    except Exception:
        pass
    # Leave headroom for compiler-internal scratch (v7x: ~54 MiB, v5e/v6e: ~109 MiB).
    return int(cap * 0.85)


def _pick_tile_m(n_pad, vmem_limit):
    """Row-tile size from the VMEM budget (generation-aware)."""
    # Bytes per tile row per layer:
    #   int8 A row tile, double-buffered : 2 * n_pad
    #   bf16 upcast temp of the A tile   : 2 * n_pad
    #   bf16 activations / f32 temps     : ~1.5 KiB
    per_row = 4 * n_pad + 1536
    # Resident slabs (features bf16, worst-case double buffered) + vectors + weights.
    resident = 4 * n_pad * _LANE + 6 * n_pad * 4 + (2 << 20)
    avail = vmem_limit - resident
    if avail <= per_row * _LANE:
        return _LANE
    tm = (avail // per_row) // _LANE * _LANE
    return int(min(max(tm, _LANE), 512))


def _compiler_params(vmem_limit):
    return pltpu.CompilerParams(
        dimension_semantics=("parallel",),   # row tiles shard across TCs (v7x megacore)
        vmem_limit_bytes=int(vmem_limit),
    )


# --------------------------------------------------------------------------------------
# Kernels
# --------------------------------------------------------------------------------------

def _sage_kernel(a_ref, xf_ref, deginv_ref, dinv_next_ref, wl_ref, wr_ref, b_ref, o_ref):
    """SAGEConv + ReLU (+ folded next-layer GCN column scaling) on one row tile.

    a_ref         : (tm, N)  int8   row tile of (A + I)        (pipelined from HBM)
    xf_ref        : (N, C)   bf16   resident input features
    deginv_ref    : (N, 1)   f32    1 / max(in_degree, 1)
    dinv_next_ref : (N, 1)   f32    D_hat^-1/2 of the consuming GCN layer
    wl_ref, wr_ref: (C, H)   bf16   Wl^T, Wr^T
    b_ref         : (1, H)   f32
    o_ref         : (tm, H)  bf16   dinv_next * relu(SAGE(x)) row tile
    """
    f32 = jnp.float32
    tm = o_ref.shape[0]
    r0 = pl.multiple_of(pl.program_id(0) * tm, tm)

    a = a_ref[...].astype(jnp.bfloat16)                 # int8 -> bf16 right after the DMA
    xt = xf_ref[pl.ds(r0, tm), :]                       # self rows, sliced from resident slab

    # (A+I) @ x - x == A @ x  -> scatter-mean numerator; deginv gives the mean.
    agg = jnp.dot(a, xf_ref[...], preferred_element_type=f32)
    agg = (agg - xt.astype(f32)) * deginv_ref[pl.ds(r0, tm), :]

    h = jnp.dot(agg.astype(jnp.bfloat16), wl_ref[...], preferred_element_type=f32)
    h = h + jnp.dot(xt, wr_ref[...], preferred_element_type=f32)
    h = jnp.maximum(h + b_ref[...], 0.0)
    # Fold the next GCN layer's D^-1/2 column scaling into the store (relu commutes
    # with a non-negative scale) so the GCN kernel does no per-tile rescale.
    o_ref[...] = (h * dinv_next_ref[pl.ds(r0, tm), :]).astype(o_ref.dtype)


def _gcn_kernel(a_ref, hs_ref, selfc_ref, dinv_ref, w_ref, b_ref, o_ref):
    """GCNConv + ReLU on one row tile.

    a_ref     : (tm, N) int8   row tile of (A + I)
    hs_ref    : (N, C)  bf16   resident features, already scaled by D_hat^-1/2 (columns)
    selfc_ref : (N, 1)  f32    1.0 where edge_index had an explicit self-loop, else 0.0
    dinv_ref  : (N, 1)  f32    D_hat^-1/2 (row scaling)
    w_ref     : (C, C)  bf16   W^T
    b_ref     : (1, C)  f32
    o_ref     : (tm, C) bf16
    """
    f32 = jnp.float32
    tm = o_ref.shape[0]
    r0 = pl.multiple_of(pl.program_id(0) * tm, tm)

    a = a_ref[...].astype(jnp.bfloat16)
    agg = jnp.dot(a, hs_ref[...], preferred_element_type=f32)
    # a_hat always carries +1 on the diagonal; PyG's add_remaining_self_loops keeps an
    # existing explicit self-loop instead of adding another -> subtract the extra one.
    agg = agg - selfc_ref[pl.ds(r0, tm), :] * hs_ref[pl.ds(r0, tm), :].astype(f32)
    agg = agg * dinv_ref[pl.ds(r0, tm), :]
    z = jnp.dot(agg.astype(jnp.bfloat16), w_ref[...], preferred_element_type=f32) + b_ref[...]
    o_ref[...] = jnp.maximum(z, 0.0).astype(o_ref.dtype)


def _gcn_fc_kernel(a_ref, hs_ref, selfc_ref, dinv_ref, w_ref, b_ref, wfc_ref, bfc_ref, o_ref):
    """GCNConv + ReLU + fused final Linear on one row tile (f32 output)."""
    f32 = jnp.float32
    tm = o_ref.shape[0]
    r0 = pl.multiple_of(pl.program_id(0) * tm, tm)

    a = a_ref[...].astype(jnp.bfloat16)
    agg = jnp.dot(a, hs_ref[...], preferred_element_type=f32)
    agg = agg - selfc_ref[pl.ds(r0, tm), :] * hs_ref[pl.ds(r0, tm), :].astype(f32)
    agg = agg * dinv_ref[pl.ds(r0, tm), :]
    z = jnp.dot(agg.astype(jnp.bfloat16), w_ref[...], preferred_element_type=f32) + b_ref[...]
    h = jnp.maximum(z, 0.0)
    out = jnp.dot(h.astype(jnp.bfloat16), wfc_ref[...], preferred_element_type=f32) + bfc_ref[...]
    o_ref[...] = out.astype(o_ref.dtype)


# --------------------------------------------------------------------------------------
# Layer wrappers (row-tiled pallas_call per layer)
# --------------------------------------------------------------------------------------

def _sage_layer(a_hat, x, deginv, dinv_next, wl, wr, b, tm, vmem_limit):
    n_pad, c_in = x.shape
    c_out = wl.shape[1]
    return pl.pallas_call(
        _sage_kernel,
        out_shape=jax.ShapeDtypeStruct((n_pad, c_out), jnp.bfloat16),
        grid=(n_pad // tm,),
        in_specs=[
            pl.BlockSpec((tm, n_pad), lambda i: (i, 0)),     # int8 (A+I) row tile (pipelined)
            pl.BlockSpec((n_pad, c_in), lambda i: (0, 0)),   # resident features
            pl.BlockSpec((n_pad, 1), lambda i: (0, 0)),      # 1/max(deg,1)
            pl.BlockSpec((n_pad, 1), lambda i: (0, 0)),      # next GCN D^-1/2 (folded into store)
            pl.BlockSpec((c_in, c_out), lambda i: (0, 0)),   # Wl^T
            pl.BlockSpec((c_in, c_out), lambda i: (0, 0)),   # Wr^T
            pl.BlockSpec((1, c_out), lambda i: (0, 0)),      # bias
        ],
        out_specs=pl.BlockSpec((tm, c_out), lambda i: (i, 0)),
        compiler_params=_compiler_params(vmem_limit),
    )(a_hat, x, deginv, dinv_next, wl, wr, b)


def _gcn_layer(a_hat, hs, self_corr, dinv, w, b, tm, vmem_limit, wfc=None, bfc=None):
    n_pad, c_in = hs.shape
    in_specs = [
        pl.BlockSpec((tm, n_pad), lambda i: (i, 0)),         # int8 (A+I) row tile (pipelined)
        pl.BlockSpec((n_pad, c_in), lambda i: (0, 0)),       # resident pre-scaled features
        pl.BlockSpec((n_pad, 1), lambda i: (0, 0)),          # explicit self-loop correction
        pl.BlockSpec((n_pad, 1), lambda i: (0, 0)),          # D^-1/2 (row scaling)
        pl.BlockSpec((c_in, w.shape[1]), lambda i: (0, 0)),  # W^T
        pl.BlockSpec((1, w.shape[1]), lambda i: (0, 0)),     # bias
    ]
    args = (a_hat, hs, self_corr, dinv, w, b)
    if wfc is None:
        kernel, c_out, out_dtype = _gcn_kernel, w.shape[1], jnp.bfloat16
    else:
        kernel, c_out, out_dtype = _gcn_fc_kernel, wfc.shape[1], jnp.float32
        in_specs += [
            pl.BlockSpec((wfc.shape[0], c_out), lambda i: (0, 0)),
            pl.BlockSpec((1, c_out), lambda i: (0, 0)),
        ]
        args = args + (wfc, bfc)
    return pl.pallas_call(
        kernel,
        out_shape=jax.ShapeDtypeStruct((n_pad, c_out), out_dtype),
        grid=(n_pad // tm,),
        in_specs=in_specs,
        out_specs=pl.BlockSpec((tm, c_out), lambda i: (i, 0)),
        compiler_params=_compiler_params(vmem_limit),
    )(*args)


# --------------------------------------------------------------------------------------
# Glue: graph operands + full forward
# --------------------------------------------------------------------------------------

def build_graph_operands(edge_index, n_pad):
    """Single int8 (A+I) slab + degree scalings from edge_index [2, E].

    Built with one int32 scatter (no f32 N^2 intermediates).  Cache the result across
    forwards when the graph is static.
    """
    src = edge_index[0].astype(jnp.int32)
    dst = edge_index[1].astype(jnp.int32)
    diag = jnp.arange(n_pad, dtype=jnp.int32)
    a_hat = jnp.zeros((n_pad, n_pad), jnp.int32)
    a_hat = a_hat.at[jnp.concatenate([dst, diag]), jnp.concatenate([src, diag])].add(1)

    row_sum = a_hat.sum(axis=1).astype(jnp.float32)            # = in_degree(A) + 1
    diag_val = jnp.diagonal(a_hat)
    self_corr = (diag_val > 1).astype(jnp.float32)              # explicit self-loop present
    deg_sage = row_sum - 1.0
    deg_gcn = row_sum - self_corr                                # PyG add_remaining_self_loops degree
    deginv_sage = (1.0 / jnp.maximum(deg_sage, 1.0)).reshape(n_pad, 1)
    dinv_gcn = jnp.where(deg_gcn > 0.0, jax.lax.rsqrt(deg_gcn), 0.0).reshape(n_pad, 1)
    # TODO(synk): int8 storage assumes per-(dst,src) edge multiplicity <= 126.
    return a_hat.astype(jnp.int8), deginv_sage, dinv_gcn, self_corr.reshape(n_pad, 1)


def graph_gcn_forward(x, edge_index, params, tile_m=None):
    n, cin = x.shape
    h1 = params["b1l"].shape[0]
    h2 = params["b3l"].shape[0]
    cout = params["bfc"].shape[0]

    # Pad channel dims to lane width (128) -> lane-dense matmuls and unmasked stores.
    cin_p = _round_up(cin, _LANE)
    h1_p = _round_up(h1, _LANE)
    h2_p = _round_up(h2, _LANE)
    cout_p = _round_up(cout, _LANE)

    vmem_limit = _vmem_limit_bytes()
    n128 = _round_up(n, _LANE)
    tm = tile_m if tile_m is not None else _pick_tile_m(n128, vmem_limit)
    tm = max(_LANE, (min(tm, n128) // _LANE) * _LANE)
    if n128 >= 2 * _LANE:                           # keep >= 2 row tiles for v7x megacore
        tm = min(tm, max(_LANE, ((n128 // 2) // _LANE) * _LANE))
    n_pad = _round_up(n, tm)

    a_hat, deginv_sage, dinv_gcn, self_corr = build_graph_operands(edge_index, n_pad)
    xp = _pad2d(x.astype(jnp.float32), n_pad, cin_p).astype(jnp.bfloat16)

    def pad_wT(w, cp_in, cp_out):
        return _pad2d(w.T.astype(jnp.float32), cp_in, cp_out).astype(jnp.bfloat16)

    def pad_b(b, cp):
        return _pad2d(b.astype(jnp.float32)[None, :], 1, cp)

    w1l = pad_wT(params["w1l"], cin_p, h1_p)
    w1r = pad_wT(params["w1r"], cin_p, h1_p)
    b1 = pad_b(params["b1l"], h1_p)
    w2 = pad_wT(params["w2"], h1_p, h1_p)
    b2 = pad_b(params["b2"], h1_p)
    w3l = pad_wT(params["w3l"], h1_p, h2_p)
    w3r = pad_wT(params["w3r"], h1_p, h2_p)
    b3 = pad_b(params["b3l"], h2_p)
    w4 = pad_wT(params["w4"], h2_p, h2_p)
    b4 = pad_b(params["b4"], h2_p)
    wfc = pad_wT(params["wfc"], h2_p, cout_p)
    bfc = pad_b(params["bfc"], cout_p)

    # SAGE outputs are stored pre-scaled by dinv_gcn (they only feed GCN layers);
    # GCN2's output is stored unscaled (it feeds SAGE3).
    h = _sage_layer(a_hat, xp, deginv_sage, dinv_gcn, w1l, w1r, b1, tm, vmem_limit)   # SAGE1+relu
    h = _gcn_layer(a_hat, h, self_corr, dinv_gcn, w2, b2, tm, vmem_limit)             # GCN2 +relu
    h = _sage_layer(a_hat, h, deginv_sage, dinv_gcn, w3l, w3r, b3, tm, vmem_limit)    # SAGE3+relu
    out = _gcn_layer(a_hat, h, self_corr, dinv_gcn, w4, b4, tm, vmem_limit,
                     wfc=wfc, bfc=bfc)                                                # GCN4+relu+fc
    return out[:n, :cout]


def init_params(key, in_channels, h1, h2, out_channels):
    ks = jax.random.split(key, 10)

    def w(k, shape, fan_in):
        return (jax.random.uniform(k, shape, jnp.float32, -1.0, 1.0)
                / jnp.sqrt(jnp.float32(fan_in)))

    return {
        # SAGEConv 1: lin_l (bias) on aggregated neighbors, lin_r (no bias) on self
        "w1l": w(ks[0], (h1, in_channels), in_channels),
        "b1l": w(ks[1], (h1,), in_channels),
        "w1r": w(ks[2], (h1, in_channels), in_channels),
        # GCNConv 2
        "w2": w(ks[3], (h1, h1), h1),
        "b2": jnp.zeros((h1,), jnp.float32),
        # SAGEConv 3
        "w3l": w(ks[4], (h2, h1), h1),
        "b3l": w(ks[5], (h2,), h1),
        "w3r": w(ks[6], (h2, h1), h1),
        # GCNConv 4
        "w4": w(ks[7], (h2, h2), h2),
        "b4": jnp.zeros((h2,), jnp.float32),
        # fc
        "wfc": w(ks[8], (out_channels, h2), h2),
        "bfc": w(ks[9], (out_channels,), h2),
    }


if __name__ == "__main__":
    key = jax.random.PRNGKey(0)
    k_x, k_e, k_p = jax.random.split(key, 3)

    num_nodes = 32
    in_channels, h1, h2, out_channels = 8, 32, 32, 16
    num_edges = 96

    x = jax.random.normal(k_x, (num_nodes, in_channels), jnp.float32)
    edge_index = jax.random.randint(k_e, (2, num_edges), 0, num_nodes, jnp.int32)

    params = init_params(k_p, in_channels, h1, h2, out_channels)

    out = graph_gcn_forward(x, edge_index, params)
    jax.block_until_ready(out)
    assert out.shape == (num_nodes, out_channels)
    print("KERNEL_OK")
</pallas_src>

<mosaic_0001>
module attributes {stable_mosaic.version = 11 : i64} {
  func.func @_sage_kernel(%arg0: i32, %arg1: memref<128x128xi8, #tpu.memory_space<vmem>>, %arg2: memref<128x128xbf16, #tpu.memory_space<vmem>>, %arg3: memref<128x1xf32, #tpu.memory_space<vmem>>, %arg4: memref<128x1xf32, #tpu.memory_space<vmem>>, %arg5: memref<128x128xbf16, #tpu.memory_space<vmem>>, %arg6: memref<128x128xbf16, #tpu.memory_space<vmem>>, %arg7: memref<1x128xf32, #tpu.memory_space<vmem>>, %arg8: memref<128x128xbf16, #tpu.memory_space<vmem>>) attributes {dimension_semantics = [#tpu.dimension_semantics<parallel>], iteration_bounds = array<i64: 1>, scalar_prefetch = 0 : i64, scratch_operands = 0 : i64, tpu.core_type = #tpu.core_type<tc>, window_params = [{transform_indices = @transform_0, window_bounds = array<i64: 128, 128>}, {pipeline_mode = #tpu.pipeline_mode<synchronous>, transform_indices = @transform_1, window_bounds = array<i64: 128, 128>}, {pipeline_mode = #tpu.pipeline_mode<synchronous>, transform_indices = @transform_2, window_bounds = array<i64: 128, 1>}, {pipeline_mode = #tpu.pipeline_mode<synchronous>, transform_indices = @transform_3, window_bounds = array<i64: 128, 1>}, {pipeline_mode = #tpu.pipeline_mode<synchronous>, transform_indices = @transform_4, window_bounds = array<i64: 128, 128>}, {pipeline_mode = #tpu.pipeline_mode<synchronous>, transform_indices = @transform_5, window_bounds = array<i64: 128, 128>}, {pipeline_mode = #tpu.pipeline_mode<synchronous>, transform_indices = @transform_6, window_bounds = array<i64: 1, 128>}, {transform_indices = @transform_7, window_bounds = array<i64: 128, 128>}]} {
    %c128_i32 = arith.constant 128 : i32
    %0 = arith.muli %arg0, %c128_i32 : i32
    %1 = tpu.assume_multiple %0, 128 : i32
    %c0 = arith.constant 0 : index
    %c0_0 = arith.constant 0 : index
    %2 = vector.load %arg1[%c0, %c0_0] : memref<128x128xi8, #tpu.memory_space<vmem>>, vector<128x128xi8>
    %3 = arith.sitofp %2 : vector<128x128xi8> to vector<128x128xbf16>
    %4 = arith.index_cast %1 : i32 to index
    %c0_1 = arith.constant 0 : index
    %5 = vector.load %arg2[%4, %c0_1] : memref<128x128xbf16, #tpu.memory_space<vmem>>, vector<128x128xbf16>
    %c0_2 = arith.constant 0 : index
    %c0_3 = arith.constant 0 : index
    %6 = vector.load %arg2[%c0_2, %c0_3] : memref<128x128xbf16, #tpu.memory_space<vmem>>, vector<128x128xbf16>
    %cst = arith.constant dense<0.000000e+00> : vector<128x128xf32>
    %7 = tpu.matmul %3, %6, %cst {dimension_numbers = #tpu.dot_dimension_numbers<[1], [0], [0], [1], [0, 0, 1, 1], [], []>} : vector<128x128xbf16>, vector<128x128xbf16>, vector<128x128xf32> -> vector<128x128xf32>
    %8 = arith.extf %5 : vector<128x128xbf16> to vector<128x128xf32>
    %9 = arith.subf %7, %8 : vector<128x128xf32>
    %10 = arith.index_cast %1 : i32 to index
    %c0_4 = arith.constant 0 : index
    %11 = vector.load %arg3[%10, %c0_4] : memref<128x1xf32, #tpu.memory_space<vmem>>, vector<128x1xf32>
    %12 = vector.broadcast %11 : vector<128x1xf32> to vector<128x128xf32>
    %13 = arith.mulf %9, %12 : vector<128x128xf32>
    %14 = arith.truncf %13 : vector<128x128xf32> to vector<128x128xbf16>
    %c0_5 = arith.constant 0 : index
    %c0_6 = arith.constant 0 : index
    %15 = vector.load %arg5[%c0_5, %c0_6] : memref<128x128xbf16, #tpu.memory_space<vmem>>, vector<128x128xbf16>
    %cst_7 = arith.constant dense<0.000000e+00> : vector<128x128xf32>
    %16 = tpu.matmul %14, %15, %cst_7 {dimension_numbers = #tpu.dot_dimension_numbers<[1], [0], [0], [1], [0, 0, 1, 1], [], []>} : vector<128x128xbf16>, vector<128x128xbf16>, vector<128x128xf32> -> vector<128x128xf32>
    %c0_8 = arith.constant 0 : index
    %c0_9 = arith.constant 0 : index
    %17 = vector.load %arg6[%c0_8, %c0_9] : memref<128x128xbf16, #tpu.memory_space<vmem>>, vector<128x128xbf16>
    %cst_10 = arith.constant dense<0.000000e+00> : vector<128x128xf32>
    %18 = tpu.matmul %5, %17, %cst_10 {dimension_numbers = #tpu.dot_dimension_numbers<[1], [0], [0], [1], [0, 0, 1, 1], [], []>} : vector<128x128xbf16>, vector<128x128xbf16>, vector<128x128xf32> -> vector<128x128xf32>
    %19 = arith.addf %16, %18 : vector<128x128xf32>
    %c0_11 = arith.constant 0 : index
    %c0_12 = arith.constant 0 : index
    %20 = vector.load %arg7[%c0_11, %c0_12] : memref<1x128xf32, #tpu.memory_space<vmem>>, vector<1x128xf32>
    %21 = vector.broadcast %20 : vector<1x128xf32> to vector<128x128xf32>
    %22 = arith.addf %19, %21 : vector<128x128xf32>
    %cst_13 = arith.constant 0.000000e+00 : f32
    %23 = vector.broadcast %cst_13 : f32 to vector<128x128xf32>
    %24 = arith.maximumf %22, %23 : vector<128x128xf32>
    %25 = arith.index_cast %1 : i32 to index
    %c0_14 = arith.constant 0 : index
    %26 = vector.load %arg4[%25, %c0_14] : memref<128x1xf32, #tpu.memory_space<vmem>>, vector<128x1xf32>
    %27 = vector.broadcast %26 : vector<128x1xf32> to vector<128x128xf32>
    %28 = arith.mulf %24, %27 : vector<128x128xf32>
    %29 = arith.truncf %28 : vector<128x128xf32> to vector<128x128xbf16>
    %c0_15 = arith.constant 0 : index
    %c0_16 = arith.constant 0 : index
    %30 = vector.load %arg8[%c0_15, %c0_16] : memref<128x128xbf16, #tpu.memory_space<vmem>>, vector<128x128xbf16>
    tpu.vector_store %arg8[%c0_15, %c0_16], %29 {strides = array<i32>} : memref<128x128xbf16, #tpu.memory_space<vmem>>, vector<128x128xbf16>,
    return
  }
  func.func @transform_0(%arg0: i32) -> (i32, i32) {
    %c0_i32 = arith.constant 0 : i32
    %c0_i32_0 = arith.constant 0 : i32
    return %arg0, %c0_i32 : i32, i32
  }
  func.func @transform_1(%arg0: i32) -> (i32, i32) {
    %c0_i32 = arith.constant 0 : i32
    %c0_i32_0 = arith.constant 0 : i32
    %c0_i32_1 = arith.constant 0 : i32
    return %c0_i32, %c0_i32_0 : i32, i32
  }
  func.func @transform_2(%arg0: i32) -> (i32, i32) {
    %c0_i32 = arith.constant 0 : i32
    %c0_i32_0 = arith.constant 0 : i32
    %c0_i32_1 = arith.constant 0 : i32
    return %c0_i32, %c0_i32_0 : i32, i32
  }
  func.func @transform_3(%arg0: i32) -> (i32, i32) {
    %c0_i32 = arith.constant 0 : i32
    %c0_i32_0 = arith.constant 0 : i32
    %c0_i32_1 = arith.constant 0 : i32
    return %c0_i32, %c0_i32_0 : i32, i32
  }
  func.func @transform_4(%arg0: i32) -> (i32, i32) {
    %c0_i32 = arith.constant 0 : i32
    %c0_i32_0 = arith.constant 0 : i32
    %c0_i32_1 = arith.constant 0 : i32
    return %c0_i32, %c0_i32_0 : i32, i32
  }
  func.func @transform_5(%arg0: i32) -> (i32, i32) {
    %c0_i32 = arith.constant 0 : i32
    %c0_i32_0 = arith.constant 0 : i32
    %c0_i32_1 = arith.constant 0 : i32
    return %c0_i32, %c0_i32_0 : i32, i32
  }
  func.func @transform_6(%arg0: i32) -> (i32, i32) {
    %c0_i32 = arith.constant 0 : i32
    %c0_i32_0 = arith.constant 0 : i32
    %c0_i32_1 = arith.constant 0 : i32
    return %c0_i32, %c0_i32_0 : i32, i32
  }
  func.func @transform_7(%arg0: i32) -> (i32, i32) {
    %c0_i32 = arith.constant 0 : i32
    %c0_i32_0 = arith.constant 0 : i32
    return %arg0, %c0_i32 : i32, i32
  }
}

</mosaic_0001>

<llo_original>
// kernel: tpu_custom_call.1
$region0: #{tpu_custom_call.1}
  #allocation0 [shape = 'u32[]', space=smem, size = 0x4, offset = 0x4, fixed_abs, tag = 'smem constant byte address 0x4 - core index']
  #allocation1 [shape = 'u32[144,128]{1,0:T(1,128)}', space=vmem, size = 0x12000, scoped, tag = 'internal scratch']
  %s0 = inlined_call_operand.hbm [shape: s8[128,128], index: 0, kind: input, shape index: {}]
  %s1 = inlined_call_operand.hbm [shape: bf16[128,128], index: 1, kind: input, shape index: {}]
  %s2 = inlined_call_operand.hbm [shape: f32[128,1], index: 2, kind: input, shape index: {}]
  %s3 = inlined_call_operand.hbm [shape: f32[128,1], index: 3, kind: input, shape index: {}]
  %s4 = inlined_call_operand.hbm [shape: bf16[128,128], index: 4, kind: input, shape index: {}]
  %s5 = inlined_call_operand.hbm [shape: bf16[128,128], index: 5, kind: input, shape index: {}]
  %s6 = inlined_call_operand.hbm [shape: f32[1,128], index: 6, kind: input, shape index: {}]
  %s7 = inlined_call_operand.hbm [shape: bf16[128,128], index: 7, kind: output, shape index: {}]
  %s8 = sld [smem:[#allocation0]]
  $region66: #{tpu_custom_call.1} parent=0
    _
  %s10 = ssub.s32 1, %s8
  %s11 = scalar_select 0, %s10, %s8
  $region1: #{tpu_custom_call.1} parent=0
    #allocation2 [shape = 'u8[16384]{0}', space=vmem, size = 0x4000, scoped, tag = 'input window, operand 0, single buffered']
    #allocation3 [shape = 's32[1]{0}', space=sflag, size = 0x4, scoped, tag = 'scoped memory for tpu_custom_call.1']
    #allocation4 [shape = 's32[1]{0}', space=sflag, size = 0x4, scoped, tag = 'scoped memory for tpu_custom_call.1']
    #allocation5 [shape = 'u8[32768]{0}', space=vmem, size = 0x8000, scoped, tag = 'input window, operand 1, single buffered']
    #allocation6 [shape = 's32[1]{0}', space=sflag, size = 0x4, scoped, tag = 'scoped memory for tpu_custom_call.1']
    #allocation7 [shape = 'u8[65536]{0}', space=vmem, size = 0x10000, scoped, tag = 'input window, operand 2, single buffered']
    #allocation8 [shape = 'u8[65536]{0}', space=vmem, size = 0x10000, scoped, tag = 'input window, operand 3, single buffered']
    #allocation9 [shape = 's32[1]{0}', space=sflag, size = 0x4, scoped, tag = 'scoped memory for tpu_custom_call.1']
    #allocation10 [shape = 'u8[32768]{0}', space=vmem, size = 0x8000, scoped, tag = 'input window, operand 4, single buffered']
    #allocation11 [shape = 'u8[32768]{0}', space=vmem, size = 0x8000, scoped, tag = 'input window, operand 5, single buffered']
    #allocation12 [shape = 's32[1]{0}', space=sflag, size = 0x4, scoped, tag = 'scoped memory for tpu_custom_call.1']
    #allocation13 [shape = 'u8[512]{0}', space=vmem, size = 0x400, scoped, tag = 'input window, operand 6, single buffered']
    #allocation14 [shape = 'u8[32768]{0}', space=vmem, size = 0x8000, scoped, tag = 'output window, operand 0, single buffered']
    %12 = vsyncpa [#allocation3], 0
    %13 = vsyncpa [#allocation6], 0
    %14 = vsyncpa [#allocation9], 0
    %15 = vsyncpa [#allocation12], 0
    %16 = vsyncpa [#allocation4], 0
    // Predicated region
    $region2: #{tpu_custom_call.1} parent=1 // pred_check
      _
    $region3: #{tpu_custom_call.1} parent=1 // pred_check_branch
      %18 = sbr.rel (0) target = $region5
    $region4: #{tpu_custom_call.1} parent=1 // pred_region
      %s20 = ssub.s32 512, 512
      %21 = vsyncadd [#allocation3], %s20
      %s22 = sshll.u32 [#allocation2], 4
      %s23 = int_to_ptr.vmem [resolvable:$true] %s22
      %28 = dma.hbm_to_vmem [thread:$0]  %s0, 512, %s23, [#allocation3], 128, 128, 8
    $region5: #{tpu_custom_call.1} parent=1 // pred_fallthru
      _
    // Predicated region
    $region6: #{tpu_custom_call.1} parent=1 // pred_check
      _
    $region7: #{tpu_custom_call.1} parent=1 // pred_check_branch
      %30 = sbr.rel (0) target = $region9
    $region8: #{tpu_custom_call.1} parent=1 // pred_region
      %s32 = ssub.s32 1024, 1024
      %33 = vsyncadd [#allocation6], %s32
      %s34 = sshll.u32 [#allocation5], 4
      %s35 = int_to_ptr.vmem [resolvable:$true] %s34
      %40 = dma.hbm_to_vmem [thread:$0]  %s1, 1024, %s35, [#allocation6], 64, 64, 4
    $region9: #{tpu_custom_call.1} parent=1 // pred_fallthru
      _
    // Predicated region
    $region10: #{tpu_custom_call.1} parent=1 // pred_check
      _
    $region11: #{tpu_custom_call.1} parent=1 // pred_check_branch
      %42 = sbr.rel (0) target = $region13
    $region12: #{tpu_custom_call.1} parent=1 // pred_region
      %s44 = ssub.s32 2048, 2048
      %45 = vsyncadd [#allocation6], %s44
      %s46 = sshll.u32 [#allocation7], 4
      %s47 = int_to_ptr.vmem [resolvable:$true] %s46
      %52 = dma.hbm_to_vmem [thread:$0]  %s2, 2048, %s47, [#allocation6], 128, 128, 8
    $region13: #{tpu_custom_call.1} parent=1 // pred_fallthru
      _
    // Predicated region
    $region14: #{tpu_custom_call.1} parent=1 // pred_check
      _
    $region15: #{tpu_custom_call.1} parent=1 // pred_check_branch
      %54 = sbr.rel (0) target = $region17
    $region16: #{tpu_custom_call.1} parent=1 // pred_region
      %s56 = ssub.s32 2048, 2048
      %57 = vsyncadd [#allocation9], %s56
      %s58 = sshll.u32 [#allocation8], 4
      %s59 = int_to_ptr.vmem [resolvable:$true] %s58
      %64 = dma.hbm_to_vmem [thread:$0]  %s3, 2048, %s59, [#allocation9], 128, 128, 8
    $region17: #{tpu_custom_call.1} parent=1 // pred_fallthru
      _
    // Predicated region
    $region18: #{tpu_custom_call.1} parent=1 // pred_check
      _
    $region19: #{tpu_custom_call.1} parent=1 // pred_check_branch
      %66 = sbr.rel (0) target = $region21
    $region20: #{tpu_custom_call.1} parent=1 // pred_region
      %s68 = ssub.s32 1024, 1024
      %69 = vsyncadd [#allocation9], %s68
      %s70 = sshll.u32 [#allocation10], 4
      %s71 = int_to_ptr.vmem [resolvable:$true] %s70
      %76 = dma.hbm_to_vmem [thread:$0]  %s4, 1024, %s71, [#allocation9], 64, 64, 4
    $region21: #{tpu_custom_call.1} parent=1 // pred_fallthru
      _
    // Predicated region
    $region22: #{tpu_custom_call.1} parent=1 // pred_check
      _
    $region23: #{tpu_custom_call.1} parent=1 // pred_check_branch
      %78 = sbr.rel (0) target = $region25
    $region24: #{tpu_custom_call.1} parent=1 // pred_region
      %s80 = ssub.s32 1024, 1024
      %81 = vsyncadd [#allocation12], %s80
      %s82 = sshll.u32 [#allocation11], 4
      %s83 = int_to_ptr.vmem [resolvable:$true] %s82
      %88 = dma.hbm_to_vmem [thread:$0]  %s5, 1024, %s83, [#allocation12], 64, 64, 4
    $region25: #{tpu_custom_call.1} parent=1 // pred_fallthru
      _
    // Predicated region
    $region26: #{tpu_custom_call.1} parent=1 // pred_check
      _
    $region27: #{tpu_custom_call.1} parent=1 // pred_check_branch
      %90 = sbr.rel (0) target = $region29
    $region28: #{tpu_custom_call.1} parent=1 // pred_region
      %s92 = ssub.s32 16, 16
      %93 = vsyncadd [#allocation12], %s92
      %s95 = sshll.u32 [#allocation13], 4
      %s96 = int_to_ptr.vmem [resolvable:$true] %s95
      %98 = dma.hbm_to_vmem [thread:$0]  %s6, 16, %s96, [#allocation12]
    $region29: #{tpu_custom_call.1} parent=1 // pred_fallthru
      _
    // Predicated region
    $region30: #{tpu_custom_call.1} parent=1 // pred_check
      _
    $region31: #{tpu_custom_call.1} parent=1 // pred_check_branch
      %100 = sbr.rel (0) target = $region33
    $region32: #{tpu_custom_call.1} parent=1 // pred_region
      %101 = dma.done [#allocation3], 512
    $region33: #{tpu_custom_call.1} parent=1 // pred_fallthru
      _
    // Predicated region
    $region34: #{tpu_custom_call.1} parent=1 // pred_check
      _
    $region35: #{tpu_custom_call.1} parent=1 // pred_check_branch
      %103 = sbr.rel (0) target = $region37
    $region36: #{tpu_custom_call.1} parent=1 // pred_region
      %104 = dma.done [#allocation6], 1024
    $region37: #{tpu_custom_call.1} parent=1 // pred_fallthru
      _
    // Predicated region
    $region38: #{tpu_custom_call.1} parent=1 // pred_check
      _
    $region39: #{tpu_custom_call.1} parent=1 // pred_check_branch
      %106 = sbr.rel (0) target = $region41
    $region40: #{tpu_custom_call.1} parent=1 // pred_region
      %107 = dma.done [#allocation6], 2048
    $region41: #{tpu_custom_call.1} parent=1 // pred_fallthru
      _
    // Predicated region
    $region42: #{tpu_custom_call.1} parent=1 // pred_check
      _
    $region43: #{tpu_custom_call.1} parent=1 // pred_check_branch
      %109 = sbr.rel (0) target = $region45
    $region44: #{tpu_custom_call.1} parent=1 // pred_region
      %110 = dma.done [#allocation9], 2048
    $region45: #{tpu_custom_call.1} parent=1 // pred_fallthru
      _
    // Predicated region
    $region46: #{tpu_custom_call.1} parent=1 // pred_check
      _
    $region47: #{tpu_custom_call.1} parent=1 // pred_check_branch
      %112 = sbr.rel (0) target = $region49
    $region48: #{tpu_custom_call.1} parent=1 // pred_region
      %113 = dma.done [#allocation9], 1024
    $region49: #{tpu_custom_call.1} parent=1 // pred_fallthru
      _
    // Predicated region
    $region50: #{tpu_custom_call.1} parent=1 // pred_check
      _
    $region51: #{tpu_custom_call.1} parent=1 // pred_check_branch
      %115 = sbr.rel (0) target = $region53
    $region52: #{tpu_custom_call.1} parent=1 // pred_region
      %116 = dma.done [#allocation12], 1024
    $region53: #{tpu_custom_call.1} parent=1 // pred_fallthru
      _
    // Predicated region
    $region54: #{tpu_custom_call.1} parent=1 // pred_check
      _
    $region55: #{tpu_custom_call.1} parent=1 // pred_check_branch
      %118 = sbr.rel (0) target = $region57
    $region56: #{tpu_custom_call.1} parent=1 // pred_region
      %119 = dma.done [#allocation12], 16
    $region57: #{tpu_custom_call.1} parent=1 // pred_fallthru
      _
    %s121 = smul.u32 0, 128
    %v122 = vld [vmem:[#allocation2] sm:$0xff]
    %v123 = vld [vmem:[#allocation2 + $0x8] sm:$0xff]
    %v124 = vld [vmem:[#allocation2 + $0x10] sm:$0xff]
    %v125 = vld [vmem:[#allocation2 + $0x18] sm:$0xff]
    %v126 = vunpack.c.l.s8.bf16 %v122
    %v127 = vunpack.c.h.s8.bf16 %v122
    %v128 = vunpack.c.l.s8.bf16 %v123
    %v129 = vunpack.c.h.s8.bf16 %v123
    %v130 = vunpack.c.l.s8.bf16 %v124
    %v131 = vunpack.c.h.s8.bf16 %v124
    %v132 = vunpack.c.l.s8.bf16 %v125
    %v133 = vunpack.c.h.s8.bf16 %v125
    %s134 = sshra.s32 %s121, 3
    %s135 = sand.u32 %s121, 7
    %s136 = smul.addr %s134, 4
    %s137 = scalar_lea.vmem [#allocation5], %s136
    %v138 = vld [vmem:[%s137] sm:$0xf]
    %v139 = vld [vmem:[%s137 + $0x4] sm:$0xf]
    %v140 = vld [vmem:[%s137 + $0x8] sm:$0xf]
    %v141 = vld [vmem:[%s137 + $0xc] sm:$0xf]
    %v142 = vld [vmem:[%s137 + $0x10] sm:$0xf]
    %v143 = vld [vmem:[%s137 + $0x14] sm:$0xf]
    %v144 = vld [vmem:[%s137 + $0x18] sm:$0xf]
    %v145 = vld [vmem:[%s137 + $0x1c] sm:$0xf]
    %v146 = vld [vmem:[%s137 + $0x20] sm:$0xf]
    %v147 = vld [vmem:[%s137 + $0x24] sm:$0xf]
    %v148 = vld [vmem:[%s137 + $0x28] sm:$0xf]
    %v149 = vld [vmem:[%s137 + $0x2c] sm:$0xf]
    %v150 = vld [vmem:[%s137 + $0x30] sm:$0xf]
    %v151 = vld [vmem:[%s137 + $0x34] sm:$0xf]
    %v152 = vld [vmem:[%s137 + $0x38] sm:$0xf]
    %v153 = vld [vmem:[%s137 + $0x3c] sm:$0xf]
    %v154 = vld [vmem:[#allocation5] sm:$0xf]
    %v155 = vld [vmem:[#allocation5 + $0x4] sm:$0xf]
    %v156 = vld [vmem:[#allocation5 + $0x8] sm:$0xf]
    %v157 = vld [vmem:[#allocation5 + $0xc] sm:$0xf]
    %v158 = vld [vmem:[#allocation5 + $0x10] sm:$0xf]
    %v159 = vld [vmem:[#allocation5 + $0x14] sm:$0xf]
    %v160 = vld [vmem:[#allocation5 + $0x18] sm:$0xf]
    %v161 = vld [vmem:[#allocation5 + $0x1c] sm:$0xf]
    %v162 = vld [vmem:[#allocation5 + $0x20] sm:$0xf]
    %v163 = vld [vmem:[#allocation5 + $0x24] sm:$0xf]
    %v164 = vld [vmem:[#allocation5 + $0x28] sm:$0xf]
    %v165 = vld [vmem:[#allocation5 + $0x2c] sm:$0xf]
    %v166 = vld [vmem:[#allocation5 + $0x30] sm:$0xf]
    %v167 = vld [vmem:[#allocation5 + $0x34] sm:$0xf]
    %v168 = vld [vmem:[#allocation5 + $0x38] sm:$0xf]
    %v169 = vld [vmem:[#allocation5 + $0x3c] sm:$0xf]
    %v186 = vunpack.c.l.b16 %v154
    %v187 = vunpack.c.l.b16 %v155
    %v188 = vunpack.c.l.b16 %v156
    %v189 = vunpack.c.l.b16 %v157
    %v190 = vunpack.c.l.b16 %v158
    %v191 = vunpack.c.l.b16 %v159
    %v192 = vunpack.c.l.b16 %v160
    %v193 = vunpack.c.l.b16 %v161
    %v194 = vunpack.c.l.b16 %v162
    %v195 = vunpack.c.l.b16 %v163
    %v196 = vunpack.c.l.b16 %v164
    %v197 = vunpack.c.l.b16 %v165
    %v198 = vunpack.c.l.b16 %v166
    %v199 = vunpack.c.l.b16 %v167
    %v200 = vunpack.c.l.b16 %v168
    %v201 = vunpack.c.l.b16 %v169
    %v202 = vpack.c.b16 %v187, %v186
    %v203 = vpack.c.b16 %v189, %v188
    %v204 = vpack.c.b16 %v191, %v190
    %v205 = vpack.c.b16 %v193, %v192
    %v206 = vpack.c.b16 %v195, %v194
    %v207 = vpack.c.b16 %v197, %v196
    %v208 = vpack.c.b16 %v199, %v198
    %v209 = vpack.c.b16 %v201, %v200
    %218 = vmatprep.subr.bf16.mxu0 0
    %219 = vmatpush1.bf16.msra.mxu0 %v202
    %220 = vmatprep.subr.bf16.mxu0 0
    %221 = vmatpush1.bf16.msra.mxu0 %v203
    %222 = vmatprep.subr.bf16.mxu0 0
    %223 = vmatpush1.bf16.msra.mxu0 %v204
    %224 = vmatprep.subr.bf16.mxu0 0
    %225 = vmatpush1.bf16.msra.mxu0 %v205
    %226 = vmatprep.subr.bf16.mxu0 0
    %227 = vmatpush1.bf16.msra.mxu0 %v206
    %228 = vmatprep.subr.bf16.mxu0 0
    %229 = vmatpush1.bf16.msra.mxu0 %v207
    %230 = vmatprep.subr.bf16.mxu0 0
    %231 = vmatpush1.bf16.msra.mxu0 %v208
    %232 = vmatprep.subr.bf16.mxu0 0
    %233 = vmatpush1.bf16.msra.mxu0 %v209
    %234 = vmatprep.subr.bf16.mxu0 0
    %235 = vmatpush1.bf16.msra.mxu0 0
    %236 = vmatprep.subr.bf16.mxu0 0
    %237 = vmatpush1.bf16.msra.mxu0 0
    %238 = vmatprep.subr.bf16.mxu0 0
    %239 = vmatpush1.bf16.msra.mxu0 0
    %240 = vmatprep.subr.bf16.mxu0 0
    %241 = vmatpush1.bf16.msra.mxu0 0
    %242 = vmatprep.subr.bf16.mxu0 0
    %243 = vmatpush1.bf16.msra.mxu0 0
    %244 = vmatprep.subr.bf16.mxu0 0
    %245 = vmatpush1.bf16.msra.mxu0 0
    %246 = vmatprep.subr.bf16.mxu0 0
    %247 = vmatpush1.bf16.msra.mxu0 0
    %248 = vmatprep.subr.bf16.mxu0 0
    %249 = vmatpush1.bf16.msra.mxu0 0
    %250 = vmatprep.mubr.bf16.mxu0 0
    %251 = vmatmul.mubr.bf16.gmra.mrb[0].mxu0 %v126
    %v252 = vpop.f32.mrb[0].mxu0
    %v253 = vadd.f32 0.0, %v252
    %v254 = vpop.f32.mrb[0].mxu0
    %v255 = vpop.f32.mrb[0].mxu0
    %v256 = vadd.f32 0.0, %v255
    %v257 = vpop.f32.mrb[0].mxu0
    %258 = vmatprep.mubr.bf16.mxu0 0
    %259 = vmatmul.mubr.bf16.gmra.mrb[0].mxu0 %v127
    %v260 = vpop.f32.mrb[0].mxu0
    %v261 = vadd.f32 0.0, %v260
    %v262 = vpop.f32.mrb[0].mxu0
    %v263 = vpop.f32.mrb[0].mxu0
    %v264 = vadd.f32 0.0, %v263
    %v265 = vpop.f32.mrb[0].mxu0
    %266 = vmatprep.mubr.bf16.mxu0 0
    %267 = vmatmul.mubr.bf16.gmra.mrb[0].mxu0 %v128
    %v268 = vpop.f32.mrb[0].mxu0
    %v269 = vadd.f32 0.0, %v268
    %v270 = vpop.f32.mrb[0].mxu0
    %v271 = vpop.f32.mrb[0].mxu0
    %v272 = vadd.f32 0.0, %v271
    %v273 = vpop.f32.mrb[0].mxu0
    %274 = vmatprep.mubr.bf16.mxu0 0
    %275 = vmatmul.mubr.bf16.gmra.mrb[0].mxu0 %v129
    %v276 = vpop.f32.mrb[0].mxu0
    %v277 = vadd.f32 0.0, %v276
    %v278 = vpop.f32.mrb[0].mxu0
    %v279 = vpop.f32.mrb[0].mxu0
    %v280 = vadd.f32 0.0, %v279
    %v281 = vpop.f32.mrb[0].mxu0
    %282 = vmatprep.mubr.bf16.mxu0 0
    %283 = vmatmul.mubr.bf16.gmra.mrb[0].mxu0 %v130
    %v284 = vpop.f32.mrb[0].mxu0
    %v285 = vadd.f32 0.0, %v284
    %v286 = vpop.f32.mrb[0].mxu0
    %v287 = vpop.f32.mrb[0].mxu0
    %v288 = vadd.f32 0.0, %v287
    %v289 = vpop.f32.mrb[0].mxu0
    %290 = vmatprep.mubr.bf16.mxu0 0
    %291 = vmatmul.mubr.bf16.gmra.mrb[0].mxu0 %v131
    %v292 = vpop.f32.mrb[0].mxu0
    %v293 = vadd.f32 0.0, %v292
    %v294 = vpop.f32.mrb[0].mxu0
    %v295 = vpop.f32.mrb[0].mxu0
    %v296 = vadd.f32 0.0, %v295
    %v297 = vpop.f32.mrb[0].mxu0
    %298 = vmatprep.mubr.bf16.mxu0 0
    %299 = vmatmul.mubr.bf16.gmra.mrb[0].mxu0 %v132
    %v300 = vpop.f32.mrb[0].mxu0
    %v301 = vadd.f32 0.0, %v300
    %v302 = vpop.f32.mrb[0].mxu0
    %v303 = vpop.f32.mrb[0].mxu0
    %v304 = vadd.f32 0.0, %v303
    %v305 = vpop.f32.mrb[0].mxu0
    %306 = vmatprep.mubr.bf16.mxu0 0
    %307 = vmatmul.mubr.bf16.gmra.mrb[0].mxu0 %v133
    %v308 = vpop.f32.mrb[0].mxu0
    %v309 = vadd.f32 0.0, %v308
    %v310 = vpop.f32.mrb[0].mxu0
    %v311 = vpop.f32.mrb[0].mxu0
    %v312 = vadd.f32 0.0, %v311
    %v313 = vpop.f32.mrb[0].mxu0
    %314 = vdwg.mxu0
    %v315 = vunpack.c.l.bf16 %v138
    %v316 = vunpack.c.l.bf16 %v139
    %v317 = vunpack.c.l.bf16 %v140
    %v318 = vunpack.c.l.bf16 %v141
    %v319 = vunpack.c.l.bf16 %v142
    %v320 = vunpack.c.l.bf16 %v143
    %v321 = vunpack.c.l.bf16 %v144
    %v322 = vunpack.c.l.bf16 %v145
    %v323 = vunpack.c.l.bf16 %v146
    %v324 = vunpack.c.l.bf16 %v147
    %v325 = vunpack.c.l.bf16 %v148
    %v326 = vunpack.c.l.bf16 %v149
    %v327 = vunpack.c.l.bf16 %v150
    %v328 = vunpack.c.l.bf16 %v151
    %v329 = vunpack.c.l.bf16 %v152
    %v330 = vunpack.c.l.bf16 %v153
    %v331 = vsub.f32 %v253, %v315
    %v332 = vsub.f32 %v256, %v316
    %v333 = vsub.f32 %v261, %v317
    %v334 = vsub.f32 %v264, %v318
    %v335 = vsub.f32 %v269, %v319
    %v336 = vsub.f32 %v272, %v320
    %v337 = vsub.f32 %v277, %v321
    %v338 = vsub.f32 %v280, %v322
    %v339 = vsub.f32 %v285, %v323
    %v340 = vsub.f32 %v288, %v324
    %v341 = vsub.f32 %v293, %v325
    %v342 = vsub.f32 %v296, %v326
    %v343 = vsub.f32 %v301, %v327
    %v344 = vsub.f32 %v304, %v328
    %v345 = vsub.f32 %v309, %v329
    %v346 = vsub.f32 %v312, %v330
    %s347 = scalar_lea.vmem [#allocation7], %s121
    %v348 = vld [vmem:[%s347] sm:$0xff]
    %v349 = vld [vmem:[%s347 + $0x8] sm:$0xff]
    %v350 = vld [vmem:[%s347 + $0x10] sm:$0xff]
    %v351 = vld [vmem:[%s347 + $0x18] sm:$0xff]
    %v352 = vld [vmem:[%s347 + $0x20] sm:$0xff]
    %v353 = vld [vmem:[%s347 + $0x28] sm:$0xff]
    %v354 = vld [vmem:[%s347 + $0x30] sm:$0xff]
    %v355 = vld [vmem:[%s347 + $0x38] sm:$0xff]
    %v356 = vld [vmem:[%s347 + $0x40] sm:$0xff]
    %v357 = vld [vmem:[%s347 + $0x48] sm:$0xff]
    %v358 = vld [vmem:[%s347 + $0x50] sm:$0xff]
    %v359 = vld [vmem:[%s347 + $0x58] sm:$0xff]
    %v360 = vld [vmem:[%s347 + $0x60] sm:$0xff]
    %v361 = vld [vmem:[%s347 + $0x68] sm:$0xff]
    %v362 = vld [vmem:[%s347 + $0x70] sm:$0xff]
    %v363 = vld [vmem:[%s347 + $0x78] sm:$0xff]
    %365 = vset.pattern.permute.xlu0 0
    %366 = vperm.xlu0 %365, %v348
    %v367 = vpop.permute.xlu0 %366
    %370 = vset.pattern.permute.xlu0 0
    %371 = vperm.xlu0 %370, %v349
    %v372 = vpop.permute.xlu0 %371
    %375 = vset.pattern.permute.xlu0 0
    %376 = vperm.xlu0 %375, %v350
    %v377 = vpop.permute.xlu0 %376
    %380 = vset.pattern.permute.xlu0 0
    %381 = vperm.xlu0 %380, %v351
    %v382 = vpop.permute.xlu0 %381
    %385 = vset.pattern.permute.xlu0 0
    %386 = vperm.xlu0 %385, %v352
    %v387 = vpop.permute.xlu0 %386
    %390 = vset.pattern.permute.xlu0 0
    %391 = vperm.xlu0 %390, %v353
    %v392 = vpop.permute.xlu0 %391
    %395 = vset.pattern.permute.xlu0 0
    %396 = vperm.xlu0 %395, %v354
    %v397 = vpop.permute.xlu0 %396
    %400 = vset.pattern.permute.xlu0 0
    %401 = vperm.xlu0 %400, %v355
    %v402 = vpop.permute.xlu0 %401
    %405 = vset.pattern.permute.xlu0 0
    %406 = vperm.xlu0 %405, %v356
    %v407 = vpop.permute.xlu0 %406
    %410 = vset.pattern.permute.xlu0 0
    %411 = vperm.xlu0 %410, %v357
    %v412 = vpop.permute.xlu0 %411
    %415 = vset.pattern.permute.xlu0 0
    %416 = vperm.xlu0 %415, %v358
    %v417 = vpop.permute.xlu0 %416
    %420 = vset.pattern.permute.xlu0 0
    %421 = vperm.xlu0 %420, %v359
    %v422 = vpop.permute.xlu0 %421
    %425 = vset.pattern.permute.xlu0 0
    %426 = vperm.xlu0 %425, %v360
    %v427 = vpop.permute.xlu0 %426
    %430 = vset.pattern.permute.xlu0 0
    %431 = vperm.xlu0 %430, %v361
    %v432 = vpop.permute.xlu0 %431
    %435 = vset.pattern.permute.xlu0 0
    %436 = vperm.xlu0 %435, %v362
    %v437 = vpop.permute.xlu0 %436
    %440 = vset.pattern.permute.xlu0 0
    %441 = vperm.xlu0 %440, %v363
    %v442 = vpop.permute.xlu0 %441
    %v444 = vmul.f32 %v331, %v367
    %v445 = vmul.f32 %v332, %v372
    %v446 = vmul.f32 %v333, %v377
    %v447 = vmul.f32 %v334, %v382
    %v448 = vmul.f32 %v335, %v387
    %v449 = vmul.f32 %v336, %v392
    %v450 = vmul.f32 %v337, %v397
    %v451 = vmul.f32 %v338, %v402
    %v452 = vmul.f32 %v339, %v407
    %v453 = vmul.f32 %v340, %v412
    %v454 = vmul.f32 %v341, %v417
    %v455 = vmul.f32 %v342, %v422
    %v456 = vmul.f32 %v343, %v427
    %v457 = vmul.f32 %v344, %v432
    %v458 = vmul.f32 %v345, %v437
    %v459 = vmul.f32 %v346, %v442
    %v460 = vpack.c.bf16 %v445, %v444
    %v461 = vpack.c.bf16 %v447, %v446
    %v462 = vpack.c.bf16 %v449, %v448
    %v463 = vpack.c.bf16 %v451, %v450
    %v464 = vpack.c.bf16 %v453, %v452
    %v465 = vpack.c.bf16 %v455, %v454
    %v466 = vpack.c.bf16 %v457, %v456
    %v467 = vpack.c.bf16 %v459, %v458
    %v468 = vld [vmem:[#allocation10] sm:$0xf]
    %v469 = vld [vmem:[#allocation10 + $0x4] sm:$0xf]
    %v470 = vld [vmem:[#allocation10 + $0x8] sm:$0xf]
    %v471 = vld [vmem:[#allocation10 + $0xc] sm:$0xf]
    %v472 = vld [vmem:[#allocation10 + $0x10] sm:$0xf]
    %v473 = vld [vmem:[#allocation10 + $0x14] sm:$0xf]
    %v474 = vld [vmem:[#allocation10 + $0x18] sm:$0xf]
    %v475 = vld [vmem:[#allocation10 + $0x1c] sm:$0xf]
    %v476 = vld [vmem:[#allocation10 + $0x20] sm:$0xf]
    %v477 = vld [vmem:[#allocation10 + $0x24] sm:$0xf]
    %v478 = vld [vmem:[#allocation10 + $0x28] sm:$0xf]
    %v479 = vld [vmem:[#allocation10 + $0x2c] sm:$0xf]
    %v480 = vld [vmem:[#allocation10 + $0x30] sm:$0xf]
    %v481 = vld [vmem:[#allocation10 + $0x34] sm:$0xf]
    %v482 = vld [vmem:[#allocation10 + $0x38] sm:$0xf]
    %v483 = vld [vmem:[#allocation10 + $0x3c] sm:$0xf]
    %v484 = vld [vmem:[#allocation11] sm:$0xf]
    %v485 = vld [vmem:[#allocation11 + $0x4] sm:$0xf]
    %v486 = vld [vmem:[#allocation11 + $0x8] sm:$0xf]
    %v487 = vld [vmem:[#allocation11 + $0xc] sm:$0xf]
    %v488 = vld [vmem:[#allocation11 + $0x10] sm:$0xf]
    %v489 = vld [vmem:[#allocation11 + $0x14] sm:$0xf]
    %v490 = vld [vmem:[#allocation11 + $0x18] sm:$0xf]
    %v491 = vld [vmem:[#allocation11 + $0x1c] sm:$0xf]
    %v492 = vld [vmem:[#allocation11 + $0x20] sm:$0xf]
    %v493 = vld [vmem:[#allocation11 + $0x24] sm:$0xf]
    %v494 = vld [vmem:[#allocation11 + $0x28] sm:$0xf]
    %v495 = vld [vmem:[#allocation11 + $0x2c] sm:$0xf]
    %v496 = vld [vmem:[#allocation11 + $0x30] sm:$0xf]
    %v497 = vld [vmem:[#allocation11 + $0x34] sm:$0xf]
    %v498 = vld [vmem:[#allocation11 + $0x38] sm:$0xf]
    %v499 = vld [vmem:[#allocation11 + $0x3c] sm:$0xf]
    %v516 = vunpack.c.l.b16 %v138
    %v517 = vunpack.c.l.b16 %v139
    %v518 = vunpack.c.l.b16 %v140
    %v519 = vunpack.c.l.b16 %v141
    %v520 = vunpack.c.l.b16 %v142
    %v521 = vunpack.c.l.b16 %v143
    %v522 = vunpack.c.l.b16 %v144
    %v523 = vunpack.c.l.b16 %v145
    %v524 = vunpack.c.l.b16 %v146
    %v525 = vunpack.c.l.b16 %v147
    %v526 = vunpack.c.l.b16 %v148
    %v527 = vunpack.c.l.b16 %v149
    %v528 = vunpack.c.l.b16 %v150
    %v529 = vunpack.c.l.b16 %v151
    %v530 = vunpack.c.l.b16 %v152
    %v531 = vunpack.c.l.b16 %v153
    %v532 = vpack.c.b16 %v517, %v516
    %v533 = vpack.c.b16 %v519, %v518
    %v534 = vpack.c.b16 %v521, %v520
    %v535 = vpack.c.b16 %v523, %v522
    %v536 = vpack.c.b16 %v525, %v524
    %v537 = vpack.c.b16 %v527, %v526
    %v538 = vpack.c.b16 %v529, %v528
    %v539 = vpack.c.b16 %v531, %v530
    %v564 = vunpack.c.l.b16 %v484
    %v565 = vunpack.c.l.b16 %v485
    %v566 = vunpack.c.l.b16 %v486
    %v567 = vunpack.c.l.b16 %v487
    %v568 = vunpack.c.l.b16 %v488
    %v569 = vunpack.c.l.b16 %v489
    %v570 = vunpack.c.l.b16 %v490
    %v571 = vunpack.c.l.b16 %v491
    %v572 = vunpack.c.l.b16 %v492
    %v573 = vunpack.c.l.b16 %v493
    %v574 = vunpack.c.l.b16 %v494
    %v575 = vunpack.c.l.b16 %v495
    %v576 = vunpack.c.l.b16 %v496
    %v577 = vunpack.c.l.b16 %v497
    %v578 = vunpack.c.l.b16 %v498
    %v579 = vunpack.c.l.b16 %v499
    %v580 = vpack.c.b16 %v565, %v564
    %v581 = vpack.c.b16 %v567, %v566
    %v582 = vpack.c.b16 %v569, %v568
    %v583 = vpack.c.b16 %v571, %v570
    %v584 = vpack.c.b16 %v573, %v572
    %v585 = vpack.c.b16 %v575, %v574
    %v586 = vpack.c.b16 %v577, %v576
    %v587 = vpack.c.b16 %v579, %v578
    %596 = vmatprep.subr.bf16.mxu0 0
    %597 = vmatpush1.bf16.msra.mxu0 %v580
    %598 = vmatprep.subr.bf16.mxu0 0
    %599 = vmatpush1.bf16.msra.mxu0 %v581
    %600 = vmatprep.subr.bf16.mxu0 0
    %601 = vmatpush1.bf16.msra.mxu0 %v582
    %602 = vmatprep.subr.bf16.mxu0 0
    %603 = vmatpush1.bf16.msra.mxu0 %v583
    %604 = vmatprep.subr.bf16.mxu0 0
    %605 = vmatpush1.bf16.msra.mxu0 %v584
    %606 = vmatprep.subr.bf16.mxu0 0
    %607 = vmatpush1.bf16.msra.mxu0 %v585
    %608 = vmatprep.subr.bf16.mxu0 0
    %609 = vmatpush1.bf16.msra.mxu0 %v586
    %610 = vmatprep.subr.bf16.mxu0 0
    %611 = vmatpush1.bf16.msra.mxu0 %v587
    %612 = vmatprep.subr.bf16.mxu0 0
    %613 = vmatpush1.bf16.msra.mxu0 0
    %614 = vmatprep.subr.bf16.mxu0 0
    %615 = vmatpush1.bf16.msra.mxu0 0
    %616 = vmatprep.subr.bf16.mxu0 0
    %617 = vmatpush1.bf16.msra.mxu0 0
    %618 = vmatprep.subr.bf16.mxu0 0
    %619 = vmatpush1.bf16.msra.mxu0 0
    %620 = vmatprep.subr.bf16.mxu0 0
    %621 = vmatpush1.bf16.msra.mxu0 0
    %622 = vmatprep.subr.bf16.mxu0 0
    %623 = vmatpush1.bf16.msra.mxu0 0
    %624 = vmatprep.subr.bf16.mxu0 0
    %625 = vmatpush1.bf16.msra.mxu0 0
    %626 = vmatprep.subr.bf16.mxu0 0
    %627 = vmatpush1.bf16.msra.mxu0 0
    %628 = vmatprep.mubr.bf16.mxu0 0
    %629 = vmatmul.mubr.bf16.gmra.mrb[0].mxu0 %v532
    %v630 = vpop.f32.mrb[0].mxu0
    %v631 = vadd.f32 0.0, %v630
    %v632 = vpop.f32.mrb[0].mxu0
    %v633 = vpop.f32.mrb[0].mxu0
    %v634 = vadd.f32 0.0, %v633
    %v635 = vpop.f32.mrb[0].mxu0
    %636 = vmatprep.mubr.bf16.mxu0 0
    %637 = vmatmul.mubr.bf16.gmra.mrb[0].mxu0 %v533
    %v638 = vpop.f32.mrb[0].mxu0
    %v639 = vadd.f32 0.0, %v638
    %v640 = vpop.f32.mrb[0].mxu0
    %v641 = vpop.f32.mrb[0].mxu0
    %v642 = vadd.f32 0.0, %v641
    %v643 = vpop.f32.mrb[0].mxu0
    %644 = vmatprep.mubr.bf16.mxu0 0
    %645 = vmatmul.mubr.bf16.gmra.mrb[0].mxu0 %v534
    %v646 = vpop.f32.mrb[0].mxu0
    %v647 = vadd.f32 0.0, %v646
    %v648 = vpop.f32.mrb[0].mxu0
    %v649 = vpop.f32.mrb[0].mxu0
    %v650 = vadd.f32 0.0, %v649
    %v651 = vpop.f32.mrb[0].mxu0
    %652 = vmatprep.mubr.bf16.mxu0 0
    %653 = vmatmul.mubr.bf16.gmra.mrb[0].mxu0 %v535
    %v654 = vpop.f32.mrb[0].mxu0
    %v655 = vadd.f32 0.0, %v654
    %v656 = vpop.f32.mrb[0].mxu0
    %v657 = vpop.f32.mrb[0].mxu0
    %v658 = vadd.f32 0.0, %v657
    %v659 = vpop.f32.mrb[0].mxu0
    %660 = vmatprep.mubr.bf16.mxu0 0
    %661 = vmatmul.mubr.bf16.gmra.mrb[0].mxu0 %v536
    %v662 = vpop.f32.mrb[0].mxu0
    %v663 = vadd.f32 0.0, %v662
    %v664 = vpop.f32.mrb[0].mxu0
    %v665 = vpop.f32.mrb[0].mxu0
    %v666 = vadd.f32 0.0, %v665
    %v667 = vpop.f32.mrb[0].mxu0
    %668 = vmatprep.mubr.bf16.mxu0 0
    %669 = vmatmul.mubr.bf16.gmra.mrb[0].mxu0 %v537
    %v670 = vpop.f32.mrb[0].mxu0
    %v671 = vadd.f32 0.0, %v670
    %v672 = vpop.f32.mrb[0].mxu0
    %v673 = vpop.f32.mrb[0].mxu0
    %v674 = vadd.f32 0.0, %v673
    %v675 = vpop.f32.mrb[0].mxu0
    %676 = vmatprep.mubr.bf16.mxu0 0
    %677 = vmatmul.mubr.bf16.gmra.mrb[0].mxu0 %v538
    %v678 = vpop.f32.mrb[0].mxu0
    %v679 = vadd.f32 0.0, %v678
    %v680 = vpop.f32.mrb[0].mxu0
    %v681 = vpop.f32.mrb[0].mxu0
    %v682 = vadd.f32 0.0, %v681
    %v683 = vpop.f32.mrb[0].mxu0
    %684 = vmatprep.mubr.bf16.mxu0 0
    %685 = vmatmul.mubr.bf16.gmra.mrb[0].mxu0 %v539
    %v686 = vpop.f32.mrb[0].mxu0
    %v687 = vadd.f32 0.0, %v686
    %v688 = vpop.f32.mrb[0].mxu0
    %v689 = vpop.f32.mrb[0].mxu0
    %v690 = vadd.f32 0.0, %v689
    %v691 = vpop.f32.mrb[0].mxu0
    %692 = vdwg.mxu0
    %v709 = vunpack.c.l.b16 %v468
    %v710 = vunpack.c.l.b16 %v469
    %v711 = vunpack.c.l.b16 %v470
    %v712 = vunpack.c.l.b16 %v471
    %v713 = vunpack.c.l.b16 %v472
    %v714 = vunpack.c.l.b16 %v473
    %v715 = vunpack.c.l.b16 %v474
    %v716 = vunpack.c.l.b16 %v475
    %v717 = vunpack.c.l.b16 %v476
    %v718 = vunpack.c.l.b16 %v477
    %v719 = vunpack.c.l.b16 %v478
    %v720 = vunpack.c.l.b16 %v479
    %v721 = vunpack.c.l.b16 %v480
    %v722 = vunpack.c.l.b16 %v481
    %v723 = vunpack.c.l.b16 %v482
    %v724 = vunpack.c.l.b16 %v483
    %v725 = vpack.c.b16 %v710, %v709
    %v726 = vpack.c.b16 %v712, %v711
    %v727 = vpack.c.b16 %v714, %v713
    %v728 = vpack.c.b16 %v716, %v715
    %v729 = vpack.c.b16 %v718, %v717
    %v730 = vpack.c.b16 %v720, %v719
    %v731 = vpack.c.b16 %v722, %v721
    %v732 = vpack.c.b16 %v724, %v723
    %741 = vmatprep.subr.bf16.mxu0 0
    %742 = vmatpush1.bf16.msra.mxu0 %v725
    %743 = vmatprep.subr.bf16.mxu0 0
    %744 = vmatpush1.bf16.msra.mxu0 %v726
    %745 = vmatprep.subr.bf16.mxu0 0
    %746 = vmatpush1.bf16.msra.mxu0 %v727
    %747 = vmatprep.subr.bf16.mxu0 0
    %748 = vmatpush1.bf16.msra.mxu0 %v728
    %749 = vmatprep.subr.bf16.mxu0 0
    %750 = vmatpush1.bf16.msra.mxu0 %v729
    %751 = vmatprep.subr.bf16.mxu0 0
    %752 = vmatpush1.bf16.msra.mxu0 %v730
    %753 = vmatprep.subr.bf16.mxu0 0
    %754 = vmatpush1.bf16.msra.mxu0 %v731
    %755 = vmatprep.subr.bf16.mxu0 0
    %756 = vmatpush1.bf16.msra.mxu0 %v732
    %757 = vmatprep.subr.bf16.mxu0 0
    %758 = vmatpush1.bf16.msra.mxu0 0
    %759 = vmatprep.subr.bf16.mxu0 0
    %760 = vmatpush1.bf16.msra.mxu0 0
    %761 = vmatprep.subr.bf16.mxu0 0
    %762 = vmatpush1.bf16.msra.mxu0 0
    %763 = vmatprep.subr.bf16.mxu0 0
    %764 = vmatpush1.bf16.msra.mxu0 0
    %765 = vmatprep.subr.bf16.mxu0 0
    %766 = vmatpush1.bf16.msra.mxu0 0
    %767 = vmatprep.subr.bf16.mxu0 0
    %768 = vmatpush1.bf16.msra.mxu0 0
    %769 = vmatprep.subr.bf16.mxu0 0
    %770 = vmatpush1.bf16.msra.mxu0 0
    %771 = vmatprep.subr.bf16.mxu0 0
    %772 = vmatpush1.bf16.msra.mxu0 0
    %773 = vmatprep.mubr.bf16.mxu0 0
    %774 = vmatmul.mubr.bf16.gmra.mrb[0].mxu0 %v460
    %v775 = vpop.f32.mrb[0].mxu0
    %v776 = vadd.f32 %v631, %v775
    %v777 = vpop.f32.mrb[0].mxu0
    %v778 = vpop.f32.mrb[0].mxu0
    %v779 = vadd.f32 %v634, %v778
    %v780 = vpop.f32.mrb[0].mxu0
    %781 = vmatprep.mubr.bf16.mxu0 0
    %782 = vmatmul.mubr.bf16.gmra.mrb[0].mxu0 %v461
    %v783 = vpop.f32.mrb[0].mxu0
    %v784 = vadd.f32 %v639, %v783
    %v785 = vpop.f32.mrb[0].mxu0
    %v786 = vpop.f32.mrb[0].mxu0
    %v787 = vadd.f32 %v642, %v786
    %v788 = vpop.f32.mrb[0].mxu0
    %789 = vmatprep.mubr.bf16.mxu0 0
    %790 = vmatmul.mubr.bf16.gmra.mrb[0].mxu0 %v462
    %v791 = vpop.f32.mrb[0].mxu0
    %v792 = vadd.f32 %v647, %v791
    %v793 = vpop.f32.mrb[0].mxu0
    %v794 = vpop.f32.mrb[0].mxu0
    %v795 = vadd.f32 %v650, %v794
    %v796 = vpop.f32.mrb[0].mxu0
    %797 = vmatprep.mubr.bf16.mxu0 0
    %798 = vmatmul.mubr.bf16.gmra.mrb[0].mxu0 %v463
    %v799 = vpop.f32.mrb[0].mxu0
    %v800 = vadd.f32 %v655, %v799
    %v801 = vpop.f32.mrb[0].mxu0
    %v802 = vpop.f32.mrb[0].mxu0
    %v803 = vadd.f32 %v658, %v802
    %v804 = vpop.f32.mrb[0].mxu0
    %805 = vmatprep.mubr.bf16.mxu0 0
    %806 = vmatmul.mubr.bf16.gmra.mrb[0].mxu0 %v464
    %v807 = vpop.f32.mrb[0].mxu0
    %v808 = vadd.f32 %v663, %v807
    %v809 = vpop.f32.mrb[0].mxu0
    %v810 = vpop.f32.mrb[0].mxu0
    %v811 = vadd.f32 %v666, %v810
    %v812 = vpop.f32.mrb[0].mxu0
    %813 = vmatprep.mubr.bf16.mxu0 0
    %814 = vmatmul.mubr.bf16.gmra.mrb[0].mxu0 %v465
    %v815 = vpop.f32.mrb[0].mxu0
    %v816 = vadd.f32 %v671, %v815
    %v817 = vpop.f32.mrb[0].mxu0
    %v818 = vpop.f32.mrb[0].mxu0
    %v819 = vadd.f32 %v674, %v818
    %v820 = vpop.f32.mrb[0].mxu0
    %821 = vmatprep.mubr.bf16.mxu0 0
    %822 = vmatmul.mubr.bf16.gmra.mrb[0].mxu0 %v466
    %v823 = vpop.f32.mrb[0].mxu0
    %v824 = vadd.f32 %v679, %v823
    %v825 = vpop.f32.mrb[0].mxu0
    %v826 = vpop.f32.mrb[0].mxu0
    %v827 = vadd.f32 %v682, %v826
    %v828 = vpop.f32.mrb[0].mxu0
    %829 = vmatprep.mubr.bf16.mxu0 0
    %830 = vmatmul.mubr.bf16.gmra.mrb[0].mxu0 %v467
    %v831 = vpop.f32.mrb[0].mxu0
    %v832 = vadd.f32 %v687, %v831
    %v833 = vpop.f32.mrb[0].mxu0
    %v834 = vpop.f32.mrb[0].mxu0
    %v835 = vadd.f32 %v690, %v834
    %v836 = vpop.f32.mrb[0].mxu0
    %837 = vdwg.mxu0
    %v838 = vld [vmem:[#allocation13] sm:$0x1]
    %v840 = vlaneseq
    %v841 = vshrl.u32 %v840, 7
    %v842 = vsub.s32 0, %v841
    %v843 = vrot.slane %v838, %v842
    %v845 = vadd.f32 %v776, %v843
    %v846 = vadd.f32 %v779, %v843
    %v847 = vadd.f32 %v784, %v843
    %v848 = vadd.f32 %v787, %v843
    %v849 = vadd.f32 %v792, %v843
    %v850 = vadd.f32 %v795, %v843
    %v851 = vadd.f32 %v800, %v843
    %v852 = vadd.f32 %v803, %v843
    %v853 = vadd.f32 %v808, %v843
    %v854 = vadd.f32 %v811, %v843
    %v855 = vadd.f32 %v816, %v843
    %v856 = vadd.f32 %v819, %v843
    %v857 = vadd.f32 %v824, %v843
    %v858 = vadd.f32 %v827, %v843
    %v859 = vadd.f32 %v832, %v843
    %v860 = vadd.f32 %v835, %v843
    %v861 = vmax.f32 %v845, 0.0
    %v862 = vmax.f32 %v846, 0.0
    %v863 = vmax.f32 %v847, 0.0
    %v864 = vmax.f32 %v848, 0.0
    %v865 = vmax.f32 %v849, 0.0
    %v866 = vmax.f32 %v850, 0.0
    %v867 = vmax.f32 %v851, 0.0
    %v868 = vmax.f32 %v852, 0.0
    %v869 = vmax.f32 %v853, 0.0
    %v870 = vmax.f32 %v854, 0.0
    %v871 = vmax.f32 %v855, 0.0
    %v872 = vmax.f32 %v856, 0.0
    %v873 = vmax.f32 %v857, 0.0
    %v874 = vmax.f32 %v858, 0.0
    %v875 = vmax.f32 %v859, 0.0
    %v876 = vmax.f32 %v860, 0.0
    %s877 = scalar_lea.vmem [#allocation8], %s121
    %v878 = vld [vmem:[%s877] sm:$0xff]
    %v879 = vld [vmem:[%s877 + $0x8] sm:$0xff]
    %v880 = vld [vmem:[%s877 + $0x10] sm:$0xff]
    %v881 = vld [vmem:[%s877 + $0x18] sm:$0xff]
    %v882 = vld [vmem:[%s877 + $0x20] sm:$0xff]
    %v883 = vld [vmem:[%s877 + $0x28] sm:$0xff]
    %v884 = vld [vmem:[%s877 + $0x30] sm:$0xff]
    %v885 = vld [vmem:[%s877 + $0x38] sm:$0xff]
    %v886 = vld [vmem:[%s877 + $0x40] sm:$0xff]
    %v887 = vld [vmem:[%s877 + $0x48] sm:$0xff]
    %v888 = vld [vmem:[%s877 + $0x50] sm:$0xff]
    %v889 = vld [vmem:[%s877 + $0x58] sm:$0xff]
    %v890 = vld [vmem:[%s877 + $0x60] sm:$0xff]
    %v891 = vld [vmem:[%s877 + $0x68] sm:$0xff]
    %v892 = vld [vmem:[%s877 + $0x70] sm:$0xff]
    %v893 = vld [vmem:[%s877 + $0x78] sm:$0xff]
    %895 = vset.pattern.permute.xlu0 0
    %896 = vperm.xlu0 %895, %v878
    %v897 = vpop.permute.xlu0 %896
    %900 = vset.pattern.permute.xlu0 0
    %901 = vperm.xlu0 %900, %v879
    %v902 = vpop.permute.xlu0 %901
    %905 = vset.pattern.permute.xlu0 0
    %906 = vperm.xlu0 %905, %v880
    %v907 = vpop.permute.xlu0 %906
    %910 = vset.pattern.permute.xlu0 0
    %911 = vperm.xlu0 %910, %v881
    %v912 = vpop.permute.xlu0 %911
    %915 = vset.pattern.permute.xlu0 0
    %916 = vperm.xlu0 %915, %v882
    %v917 = vpop.permute.xlu0 %916
    %920 = vset.pattern.permute.xlu0 0
    %921 = vperm.xlu0 %920, %v883
    %v922 = vpop.permute.xlu0 %921
    %925 = vset.pattern.permute.xlu0 0
    %926 = vperm.xlu0 %925, %v884
    %v927 = vpop.permute.xlu0 %926
    %930 = vset.pattern.permute.xlu0 0
    %931 = vperm.xlu0 %930, %v885
    %v932 = vpop.permute.xlu0 %931
    %935 = vset.pattern.permute.xlu0 0
    %936 = vperm.xlu0 %935, %v886
    %v937 = vpop.permute.xlu0 %936
    %940 = vset.pattern.permute.xlu0 0
    %941 = vperm.xlu0 %940, %v887
    %v942 = vpop.permute.xlu0 %941
    %945 = vset.pattern.permute.xlu0 0
    %946 = vperm.xlu0 %945, %v888
    %v947 = vpop.permute.xlu0 %946
    %950 = vset.pattern.permute.xlu0 0
    %951 = vperm.xlu0 %950, %v889
    %v952 = vpop.permute.xlu0 %951
    %955 = vset.pattern.permute.xlu0 0
    %956 = vperm.xlu0 %955, %v890
    %v957 = vpop.permute.xlu0 %956
    %960 = vset.pattern.permute.xlu0 0
    %961 = vperm.xlu0 %960, %v891
    %v962 = vpop.permute.xlu0 %961
    %965 = vset.pattern.permute.xlu0 0
    %966 = vperm.xlu0 %965, %v892
    %v967 = vpop.permute.xlu0 %966
    %970 = vset.pattern.permute.xlu0 0
    %971 = vperm.xlu0 %970, %v893
    %v972 = vpop.permute.xlu0 %971
    %v974 = vmul.f32 %v861, %v897
    %v975 = vmul.f32 %v862, %v902
    %v976 = vmul.f32 %v863, %v907
    %v977 = vmul.f32 %v864, %v912
    %v978 = vmul.f32 %v865, %v917
    %v979 = vmul.f32 %v866, %v922
    %v980 = vmul.f32 %v867, %v927
    %v981 = vmul.f32 %v868, %v932
    %v982 = vmul.f32 %v869, %v937
    %v983 = vmul.f32 %v870, %v942
    %v984 = vmul.f32 %v871, %v947
    %v985 = vmul.f32 %v872, %v952
    %v986 = vmul.f32 %v873, %v957
    %v987 = vmul.f32 %v874, %v962
    %v988 = vmul.f32 %v875, %v967
    %v989 = vmul.f32 %v876, %v972
    %v990 = vpack.c.bf16 %v975, %v974
    %v991 = vpack.c.bf16 %v977, %v976
    %v992 = vpack.c.bf16 %v979, %v978
    %v993 = vpack.c.bf16 %v981, %v980
    %v994 = vpack.c.bf16 %v983, %v982
    %v995 = vpack.c.bf16 %v985, %v984
    %v996 = vpack.c.bf16 %v987, %v986
    %v997 = vpack.c.bf16 %v989, %v988
    %v1006 = vunpack.c.l.b16 %v990
    %v1007 = vunpack.c.h.b16 %v990
    %v1008 = vunpack.c.l.b16 %v991
    %v1009 = vunpack.c.h.b16 %v991
    %v1010 = vunpack.c.l.b16 %v992
    %v1011 = vunpack.c.h.b16 %v992
    %v1012 = vunpack.c.l.b16 %v993
    %v1013 = vunpack.c.h.b16 %v993
    %v1014 = vunpack.c.l.b16 %v994
    %v1015 = vunpack.c.h.b16 %v994
    %v1016 = vunpack.c.l.b16 %v995
    %v1017 = vunpack.c.h.b16 %v995
    %v1018 = vunpack.c.l.b16 %v996
    %v1019 = vunpack.c.h.b16 %v996
    %v1020 = vunpack.c.l.b16 %v997
    %v1021 = vunpack.c.h.b16 %v997
    %v1022 = vpack.c.b16 %v1006, %v1006
    %v1023 = vpack.c.b16 %v1007, %v1007
    %v1024 = vpack.c.b16 %v1008, %v1008
    %v1025 = vpack.c.b16 %v1009, %v1009
    %v1026 = vpack.c.b16 %v1010, %v1010
    %v1027 = vpack.c.b16 %v1011, %v1011
    %v1028 = vpack.c.b16 %v1012, %v1012
    %v1029 = vpack.c.b16 %v1013, %v1013
    %v1030 = vpack.c.b16 %v1014, %v1014
    %v1031 = vpack.c.b16 %v1015, %v1015
    %v1032 = vpack.c.b16 %v1016, %v1016
    %v1033 = vpack.c.b16 %v1017, %v1017
    %v1034 = vpack.c.b16 %v1018, %v1018
    %v1035 = vpack.c.b16 %v1019, %v1019
    %v1036 = vpack.c.b16 %v1020, %v1020
    %v1037 = vpack.c.b16 %v1021, %v1021
    %1054 = vst [vmem:[#allocation14] sm:$0xf] %v1022
    %1055 = vst [vmem:[#allocation14 + $0x4] sm:$0xf] %v1023
    %1056 = vst [vmem:[#allocation14 + $0x8] sm:$0xf] %v1024
    %1057 = vst [vmem:[#allocation14 + $0xc] sm:$0xf] %v1025
    %1058 = vst [vmem:[#allocation14 + $0x10] sm:$0xf] %v1026
    %1059 = vst [vmem:[#allocation14 + $0x14] sm:$0xf] %v1027
    %1060 = vst [vmem:[#allocation14 + $0x18] sm:$0xf] %v1028
    %1061 = vst [vmem:[#allocation14 + $0x1c] sm:$0xf] %v1029
    %1062 = vst [vmem:[#allocation14 + $0x20] sm:$0xf] %v1030
    %1063 = vst [vmem:[#allocation14 + $0x24] sm:$0xf] %v1031
    %1064 = vst [vmem:[#allocation14 + $0x28] sm:$0xf] %v1032
    %1065 = vst [vmem:[#allocation14 + $0x2c] sm:$0xf] %v1033
    %1066 = vst [vmem:[#allocation14 + $0x30] sm:$0xf] %v1034
    %1067 = vst [vmem:[#allocation14 + $0x34] sm:$0xf] %v1035
    %1068 = vst [vmem:[#allocation14 + $0x38] sm:$0xf] %v1036
    %1069 = vst [vmem:[#allocation14 + $0x3c] sm:$0xf] %v1037
    // Predicated region
    $region58: #{tpu_custom_call.1} parent=1 // pred_check
      _
    $region59: #{tpu_custom_call.1} parent=1 // pred_check_branch
      %1071 = sbr.rel (0) target = $region61
    $region60: #{tpu_custom_call.1} parent=1 // pred_region
      %s1073 = ssub.s32 1024, 1024
      %1074 = vsyncadd [#allocation4], %s1073
      %s1075 = sshll.u32 [#allocation14], 4
      %s1076 = int_to_ptr.vmem [resolvable:$true] %s1075
      %1081 = dma.vmem_to_hbm [thread:$0]  %s1076, 1024, %s7, [#allocation4], 64, 64, 4
    $region61: #{tpu_custom_call.1} parent=1 // pred_fallthru
      _
    // Predicated region
    $region62: #{tpu_custom_call.1} parent=1 // pred_check
      _
    $region63: #{tpu_custom_call.1} parent=1 // pred_check_branch
      %1083 = sbr.rel (0) target = $region65
    $region64: #{tpu_custom_call.1} parent=1 // pred_region
      %1084 = dma.done [#allocation4], 1024
    $region65: #{tpu_custom_call.1} parent=1 // pred_fallthru
      _
    %1085 = vsyncpa [#allocation3], 1
    %1086 = vsyncpa [#allocation6], 1
    %1087 = vsyncpa [#allocation9], 1
    %1088 = vsyncpa [#allocation12], 1
    %1089 = vsyncpa [#allocation4], 1

</llo_original>
